<compile_context>
chip_gen: v5e
topology: v5e:2x2
jax: 0.10.0
libtpu: 0.0.40
codegen_flags: <defaults>
</compile_context>

<pallas_src>
import math
from functools import partial

import jax
import jax.numpy as jnp
from jax import lax
from jax.experimental import pallas as pl
from jax.experimental.pallas import tpu as pltpu


# ---------------------------------------------------------------------------
# helpers
# ---------------------------------------------------------------------------
def _pick_tile(m, target=256):
    """Largest row-tile <= target that divides m (falls back to m)."""
    if m <= target:
        return m
    for t in (target, 128, 64, 32, 16, 8):
        if m % t == 0:
            return t
    return m


_PARALLEL_1D = pltpu.CompilerParams(dimension_semantics=("parallel",))


# ---------------------------------------------------------------------------
# Pallas kernels
# ---------------------------------------------------------------------------
def _qkv_kernel(q_ref, k_ref, v_ref, wq_ref, wk_ref, wv_ref, b_ref, o_ref):
    q = jnp.dot(q_ref[...], wq_ref[...], preferred_element_type=jnp.float32)
    k = jnp.dot(k_ref[...], wk_ref[...], preferred_element_type=jnp.float32)
    v = jnp.dot(v_ref[...], wv_ref[...], preferred_element_type=jnp.float32)
    o_ref[...] = (jnp.concatenate([q, k, v], axis=-1) + b_ref[...]).astype(o_ref.dtype)


def fused_qkv_proj(q_in, k_in, v_in, wq, wk, wv, bq, bk, bv):
    """q_in/k_in/v_in: (B,S,D); weights (D,D) (already transposed vs torch)."""
    B, S, D = q_in.shape
    M = B * S
    tm = _pick_tile(M)
    b_cat = jnp.concatenate([bq, bk, bv]).reshape(1, 3 * D)
    out = pl.pallas_call(
        _qkv_kernel,
        out_shape=jax.ShapeDtypeStruct((M, 3 * D), jnp.float32),
        grid=(M // tm,),
        in_specs=[
            pl.BlockSpec((tm, D), lambda i: (i, 0)),
            pl.BlockSpec((tm, D), lambda i: (i, 0)),
            pl.BlockSpec((tm, D), lambda i: (i, 0)),
            pl.BlockSpec((D, D), lambda i: (0, 0)),
            pl.BlockSpec((D, D), lambda i: (0, 0)),
            pl.BlockSpec((D, D), lambda i: (0, 0)),
            pl.BlockSpec((1, 3 * D), lambda i: (0, 0)),
        ],
        out_specs=pl.BlockSpec((tm, 3 * D), lambda i: (i, 0)),
        compiler_params=_PARALLEL_1D,
    )(q_in.reshape(M, D), k_in.reshape(M, D), v_in.reshape(M, D), wq, wk, wv, b_cat)
    return out.reshape(B, S, 3 * D)


def _attn_block_kernel(qkv_ref, res_ref, cum_ref, gamma_ref, wo_ref, bo_ref,
                       g_ref, b_ref, o_ref, *, n_heads, d_k, mask_flag, zero_pad, eps):
    S = qkv_ref.shape[1]
    D = n_heads * d_k
    qkv = qkv_ref[0]                                    # (S, 3D)

    def split(off):
        h = qkv[:, off * D:(off + 1) * D].reshape(S, n_heads, d_k)
        return jnp.swapaxes(h, 0, 1)                    # (H, S, d_k)

    q = split(0)
    k = split(1)
    v = split(2)

    NEG = jnp.float32(-1e32)
    inv_sqrt_dk = jnp.float32(1.0 / math.sqrt(d_k))
    # (H, S, S) scores, batched over heads (no explicit .T, contraction on last dims)
    scores = lax.dot_general(q, k, (((2,), (2,)), ((0,), (0,))),
                             preferred_element_type=jnp.float32) * inv_sqrt_dk

    row = lax.broadcasted_iota(jnp.float32, (S, S), 0)
    col = lax.broadcasted_iota(jnp.float32, (S, S), 1)
    mask = (col <= row) if mask_flag == 1 else (col < row)   # causal mask in-kernel

    def softmax(x):
        m = jnp.max(x, axis=-1, keepdims=True)
        e = jnp.exp(x - m)
        return e * pl.reciprocal(jnp.sum(e, axis=-1, keepdims=True), approx=True)

    # "no-grad" branch of the reference attention (distance statistics)
    scores_ = jnp.where(mask, scores, NEG)
    p = jnp.where(mask, softmax(scores_), 0.0)

    cum_mat = cum_ref[...]                              # (S,S), 1 where j <= t (cumsum via MXU)
    distcum = lax.dot_general(p, cum_mat, (((2,), (0,)), ((), ())),
                              preferred_element_type=jnp.float32)
    disttotal = jnp.sum(p, axis=-1, keepdims=True)
    position_effect = jnp.abs(col - row)
    dist_scores = jnp.sqrt(jnp.maximum((disttotal - distcum) * position_effect, 0.0))

    gamma = gamma_ref[...].reshape(n_heads, 1, 1)       # = -softplus(gamma_h), precomputed
    total_effect = jnp.clip(jnp.exp(dist_scores * gamma), 1e-5, 1e5)

    scores = jnp.where(mask, scores * total_effect, NEG)
    attn = softmax(scores)
    if zero_pad:
        attn = jnp.where(row == 0.0, 0.0, attn)         # zero out first query row

    ctx = lax.dot_general(attn, v, (((2,), (1,)), ((0,), (0,))),
                          preferred_element_type=jnp.float32)      # (H, S, d_k)
    concat = jnp.swapaxes(ctx, 0, 1).reshape(S, D)      # lane-dense (S, D)

    # fused output projection + residual + LayerNorm1
    proj = jnp.dot(concat, wo_ref[...], preferred_element_type=jnp.float32) + bo_ref[...]
    x = res_ref[0] + proj
    mean = jnp.mean(x, axis=-1, keepdims=True)
    var = jnp.mean((x - mean) ** 2, axis=-1, keepdims=True)
    y = (x - mean) * lax.rsqrt(var + eps)
    o_ref[0] = (y * g_ref[...] + b_ref[...]).astype(o_ref.dtype)


def pallas_attention_block(qkv, residual, gamma_eff, wo, bo, ln_g, ln_b,
                           n_heads, d_k, mask_flag, zero_pad, eps=1e-5):
    """qkv: (B,S,3D); residual: (B,S,D); gamma_eff: (H,) = -softplus(gamma)."""
    B, S, D3 = qkv.shape
    D = D3 // 3
    cum_mat = (jnp.arange(S)[:, None] <= jnp.arange(S)[None, :]).astype(jnp.float32)
    gamma2 = gamma_eff.reshape(n_heads, 1)
    return pl.pallas_call(
        partial(_attn_block_kernel, n_heads=n_heads, d_k=d_k,
                mask_flag=mask_flag, zero_pad=zero_pad, eps=eps),
        out_shape=jax.ShapeDtypeStruct((B, S, D), jnp.float32),
        grid=(B,),
        in_specs=[
            pl.BlockSpec((1, S, 3 * D), lambda b: (b, 0, 0)),
            pl.BlockSpec((1, S, D), lambda b: (b, 0, 0)),
            pl.BlockSpec((S, S), lambda b: (0, 0)),
            pl.BlockSpec((n_heads, 1), lambda b: (0, 0)),
            pl.BlockSpec((D, D), lambda b: (0, 0)),
            pl.BlockSpec((1, D), lambda b: (0, 0)),
            pl.BlockSpec((1, D), lambda b: (0, 0)),
            pl.BlockSpec((1, D), lambda b: (0, 0)),
        ],
        out_specs=pl.BlockSpec((1, S, D), lambda b: (b, 0, 0)),
        compiler_params=_PARALLEL_1D,
    )(qkv, residual, cum_mat, gamma2, wo, bo.reshape(1, D),
      ln_g.reshape(1, D), ln_b.reshape(1, D))


def _ffn_block_kernel(x_ref, w1_ref, b1_ref, w2_ref, b2_ref, g_ref, b_ref, o_ref, *, eps):
    x = x_ref[...]
    h = jnp.dot(x, w1_ref[...], preferred_element_type=jnp.float32) + b1_ref[...]
    h = jnp.maximum(h, 0.0)
    y = x + jnp.dot(h, w2_ref[...], preferred_element_type=jnp.float32) + b2_ref[...]
    mean = jnp.mean(y, axis=-1, keepdims=True)
    var = jnp.mean((y - mean) ** 2, axis=-1, keepdims=True)
    z = (y - mean) * lax.rsqrt(var + eps)
    o_ref[...] = (z * g_ref[...] + b_ref[...]).astype(o_ref.dtype)


def pallas_ffn_block(x, w1, b1, w2, b2, ln_g, ln_b, eps=1e-5):
    """LayerNorm(x + FFN(x)) fused; x: (B,S,D)."""
    B, S, D = x.shape
    M = B * S
    F = w1.shape[1]
    tm = _pick_tile(M)
    out = pl.pallas_call(
        partial(_ffn_block_kernel, eps=eps),
        out_shape=jax.ShapeDtypeStruct((M, D), jnp.float32),
        grid=(M // tm,),
        in_specs=[
            pl.BlockSpec((tm, D), lambda i: (i, 0)),
            pl.BlockSpec((D, F), lambda i: (0, 0)),
            pl.BlockSpec((1, F), lambda i: (0, 0)),
            pl.BlockSpec((F, D), lambda i: (0, 0)),
            pl.BlockSpec((1, D), lambda i: (0, 0)),
            pl.BlockSpec((1, D), lambda i: (0, 0)),
            pl.BlockSpec((1, D), lambda i: (0, 0)),
        ],
        out_specs=pl.BlockSpec((tm, D), lambda i: (i, 0)),
        compiler_params=_PARALLEL_1D,
    )(x.reshape(M, D), w1, b1.reshape(1, F), w2, b2.reshape(1, D),
      ln_g.reshape(1, D), ln_b.reshape(1, D))
    return out.reshape(B, S, D)


def _out_mlp_kernel(d_ref, q_ref, w1a_ref, w1b_ref, b1_ref, w2_ref, b2_ref,
                    w3_ref, b3_ref, o_ref):
    h = (jnp.dot(d_ref[...], w1a_ref[...], preferred_element_type=jnp.float32)
         + jnp.dot(q_ref[...], w1b_ref[...], preferred_element_type=jnp.float32)
         + b1_ref[...])
    h = jnp.maximum(h, 0.0)
    h = jnp.dot(h, w2_ref[...], preferred_element_type=jnp.float32) + b2_ref[...]
    h = jnp.maximum(h, 0.0)
    o = jnp.dot(h, w3_ref[...], preferred_element_type=jnp.float32) + b3_ref[...]
    o_ref[...] = o.astype(o_ref.dtype)


def pallas_out_mlp(d_out, q_emb, w1, b1, w2, b2, w3, b3):
    """Final prediction MLP: concat(d_out, q_emb) -> fc -> relu -> 256 -> relu -> 1.
    The concat is folded into two half-weight matmuls to avoid materializing (M, 2D)."""
    B, S, D = d_out.shape
    M = B * S
    F1 = w1.shape[1]
    F2 = w2.shape[1]
    tm = _pick_tile(M)
    w1a, w1b = w1[:D], w1[D:]
    out = pl.pallas_call(
        _out_mlp_kernel,
        out_shape=jax.ShapeDtypeStruct((M, 1), jnp.float32),
        grid=(M // tm,),
        in_specs=[
            pl.BlockSpec((tm, D), lambda i: (i, 0)),
            pl.BlockSpec((tm, D), lambda i: (i, 0)),
            pl.BlockSpec((D, F1), lambda i: (0, 0)),
            pl.BlockSpec((D, F1), lambda i: (0, 0)),
            pl.BlockSpec((1, F1), lambda i: (0, 0)),
            pl.BlockSpec((F1, F2), lambda i: (0, 0)),
            pl.BlockSpec((1, F2), lambda i: (0, 0)),
            pl.BlockSpec((F2, 1), lambda i: (0, 0)),
            pl.BlockSpec((1, 1), lambda i: (0, 0)),
        ],
        out_specs=pl.BlockSpec((tm, 1), lambda i: (i, 0)),
        compiler_params=_PARALLEL_1D,
    )(d_out.reshape(M, D), q_emb.reshape(M, D), w1a, w1b, b1.reshape(1, F1),
      w2, b2.reshape(1, F2), w3, b3.reshape(1, 1))
    return out.reshape(-1)


# ---------------------------------------------------------------------------
# Model glue (plain JAX calling the Pallas kernels)
# ---------------------------------------------------------------------------
def transformer_layer(p, mask_flag, query, key, values, apply_pos, n_heads, d_k, kq_same):
    attn_p = p["attn"]
    wq = attn_p["k_w"] if kq_same else attn_p["q_w"]
    bq = attn_p["k_b"] if kq_same else attn_p["q_b"]

    qkv = fused_qkv_proj(query, key, values,
                         wq, attn_p["k_w"], attn_p["v_w"],
                         bq, attn_p["k_b"], attn_p["v_b"])

    gamma_eff = -jax.nn.softplus(attn_p["gammas"].reshape(-1))   # (H,)
    zero_pad = (mask_flag == 0)

    # fused: per-batch multi-head AKT attention + out_proj + residual + LayerNorm1
    x = pallas_attention_block(qkv, query, gamma_eff, attn_p["out_w"], attn_p["out_b"],
                               p["ln1_g"], p["ln1_b"], n_heads, d_k, mask_flag, zero_pad)
    if apply_pos:
        # fused: LayerNorm2(x + linear2(relu(linear1(x))))
        x = pallas_ffn_block(x, p["ff1_w"], p["ff1_b"], p["ff2_w"], p["ff2_b"],
                             p["ln2_g"], p["ln2_b"])
    return x


def architecture_forward(arch, q_embed, qa_embed, n_heads, d_k, kq_same):
    y = qa_embed
    x = q_embed
    for blk in arch["blocks_1"]:
        y = transformer_layer(blk, 1, y, y, y, True, n_heads, d_k, kq_same)
    flag_first = True
    for blk in arch["blocks_2"]:
        if flag_first:
            x = transformer_layer(blk, 1, x, x, x, False, n_heads, d_k, kq_same)
            flag_first = False
        else:
            x = transformer_layer(blk, 0, x, x, y, True, n_heads, d_k, kq_same)
            flag_first = True
    return x


def akt_forward(params, cfg, q_data, qa_data, target, pid_data):
    n_question = cfg["n_question"]
    n_heads = cfg["n_heads"]
    d_model = cfg["d_model"]
    d_k = d_model // n_heads
    kq_same = cfg["kq_same"] == 1

    # embedding gathers (JAX glue)
    q_embed_data = params["q_embed"][q_data]                     # (B, S, D)
    qa_idx = (qa_data - q_data) // n_question                    # in {0, 1} (separate_qa=False path)
    qa_embed_data = params["qa_embed"][qa_idx] + q_embed_data

    c_reg_loss = jnp.float32(0.0)
    if cfg["n_pid"] > 0:
        q_embed_diff = params["q_embed_diff"][q_data]
        pid_embed = params["difficult_param"][pid_data]          # (B, S, 1), zero-init (reset())
        q_embed_data = q_embed_data + pid_embed * q_embed_diff
        qa_embed_diff = params["qa_embed_diff"][qa_idx]
        if cfg["separate_qa"]:
            qa_embed_data = qa_embed_data + pid_embed * qa_embed_diff
        else:
            qa_embed_data = qa_embed_data + pid_embed * (qa_embed_diff + q_embed_diff)
        c_reg_loss = jnp.sum(pid_embed ** 2.0) * cfg["l2"]

    d_output = architecture_forward(params["arch"], q_embed_data, qa_embed_data,
                                    n_heads, d_k, kq_same)

    # fused final MLP (concat folded into split weights)
    logits = pallas_out_mlp(d_output, q_embed_data,
                            params["out_w1"], params["out_b1"],
                            params["out_w2"], params["out_b2"],
                            params["out_w3"], params["out_b3"])

    labels = target.reshape(-1).astype(jnp.float32)
    mask = labels > -0.9
    # BCE-with-logits (reduction='none'), summed over masked positions (JAX glue)
    per = jnp.maximum(logits, 0.0) - logits * labels + jnp.log1p(jnp.exp(-jnp.abs(logits)))
    loss = jnp.sum(jnp.where(mask, per, 0.0)) + c_reg_loss
    preds = jax.nn.sigmoid(logits)
    return loss, preds, jnp.sum(mask)


# ---------------------------------------------------------------------------
# Deterministic parameter init
# ---------------------------------------------------------------------------
def _xavier(key, shape):
    fan_in, fan_out = shape[0], shape[-1]
    bound = math.sqrt(6.0 / (fan_in + fan_out))
    return jax.random.uniform(key, shape, jnp.float32, -bound, bound)


def init_block(key, d_model, d_ff, n_heads, kq_same):
    ks = jax.random.split(key, 8)
    attn = {
        "k_w": _xavier(ks[0], (d_model, d_model)), "k_b": jnp.zeros((d_model,), jnp.float32),
        "v_w": _xavier(ks[1], (d_model, d_model)), "v_b": jnp.zeros((d_model,), jnp.float32),
        "out_w": _xavier(ks[2], (d_model, d_model)), "out_b": jnp.zeros((d_model,), jnp.float32),
        "gammas": jax.random.uniform(ks[3], (n_heads, 1, 1), jnp.float32, -0.5, 0.5),
    }
    if not kq_same:
        attn["q_w"] = _xavier(ks[4], (d_model, d_model))
        attn["q_b"] = jnp.zeros((d_model,), jnp.float32)
    return {
        "attn": attn,
        "ln1_g": jnp.ones((d_model,), jnp.float32), "ln1_b": jnp.zeros((d_model,), jnp.float32),
        "ff1_w": _xavier(ks[5], (d_model, d_ff)), "ff1_b": jnp.zeros((d_ff,), jnp.float32),
        "ff2_w": _xavier(ks[6], (d_ff, d_model)), "ff2_b": jnp.zeros((d_model,), jnp.float32),
        "ln2_g": jnp.ones((d_model,), jnp.float32), "ln2_b": jnp.zeros((d_model,), jnp.float32),
    }


def init_akt(key, cfg):
    n_q, n_pid, d_model = cfg["n_question"], cfg["n_pid"], cfg["d_model"]
    d_ff, n_heads, n_blocks = cfg["d_ff"], cfg["n_heads"], cfg["n_blocks"]
    kq_same = cfg["kq_same"] == 1
    keys = jax.random.split(key, 16 + 3 * n_blocks)

    params = {
        "q_embed": jax.random.normal(keys[0], (n_q + 1, d_model), jnp.float32),
        "qa_embed": jax.random.normal(keys[1], (2, d_model), jnp.float32),
    }
    if n_pid > 0:
        params["difficult_param"] = jnp.zeros((n_pid + 1, 1), jnp.float32)  # reset() -> 0
        params["q_embed_diff"] = jax.random.normal(keys[2], (n_q + 1, d_model), jnp.float32)
        params["qa_embed_diff"] = jax.random.normal(keys[3], (2 * n_q + 1, d_model), jnp.float32)

    arch = {
        "blocks_1": [init_block(keys[4 + i], d_model, d_ff, n_heads, kq_same)
                     for i in range(n_blocks)],
        "blocks_2": [init_block(keys[4 + n_blocks + i], d_model, d_ff, n_heads, kq_same)
                     for i in range(2 * n_blocks)],
    }
    params["arch"] = arch

    fdim = cfg["final_fc_dim"]
    params["out_w1"] = _xavier(keys[10], (2 * d_model, fdim))
    params["out_b1"] = jnp.zeros((fdim,), jnp.float32)
    params["out_w2"] = _xavier(keys[11], (fdim, 256))
    params["out_b2"] = jnp.zeros((256,), jnp.float32)
    params["out_w3"] = _xavier(keys[12], (256, 1))
    params["out_b3"] = jnp.zeros((1,), jnp.float32)
    return params


# ---------------------------------------------------------------------------
if __name__ == "__main__":
    cfg = dict(n_question=10, n_pid=5, d_model=32, n_blocks=1, kq_same=1,
               dropout=0.0, model_type="akt", final_fc_dim=64, n_heads=4,
               d_ff=64, l2=1e-5, separate_qa=False)

    B, S = 2, 8
    key = jax.random.PRNGKey(0)
    kp, k1, k2, k3 = jax.random.split(key, 4)

    params = init_akt(kp, cfg)

    q_data = jax.random.randint(k1, (B, S), 1, cfg["n_question"] + 1, dtype=jnp.int32)
    answers = jax.random.randint(k2, (B, S), 0, 2, dtype=jnp.int32)
    qa_data = q_data + answers * cfg["n_question"]
    pid_data = jax.random.randint(k3, (B, S), 1, cfg["n_pid"] + 1, dtype=jnp.int32)
    target = answers.astype(jnp.float32)
    target = target.at[:, -1].set(-1.0)   # some padded positions for the loss mask

    loss, preds, n_valid = akt_forward(params, cfg, q_data, qa_data, target, pid_data)
    jax.block_until_ready((loss, preds, n_valid))
    print("KERNEL_OK")
</pallas_src>

<mosaic_0001>
module attributes {stable_mosaic.version = 11 : i64} {
  func.func @_qkv_kernel(%arg0: i32, %arg1: memref<16x32xf32, #tpu.memory_space<vmem>>, %arg2: memref<16x32xf32, #tpu.memory_space<vmem>>, %arg3: memref<16x32xf32, #tpu.memory_space<vmem>>, %arg4: memref<32x32xf32, #tpu.memory_space<vmem>>, %arg5: memref<32x32xf32, #tpu.memory_space<vmem>>, %arg6: memref<32x32xf32, #tpu.memory_space<vmem>>, %arg7: memref<1x96xf32, #tpu.memory_space<vmem>>, %arg8: memref<16x96xf32, #tpu.memory_space<vmem>>) attributes {dimension_semantics = [#tpu.dimension_semantics<parallel>], iteration_bounds = array<i64: 1>, scalar_prefetch = 0 : i64, scratch_operands = 0 : i64, tpu.core_type = #tpu.core_type<tc>, window_params = [{transform_indices = @transform_0, window_bounds = array<i64: 16, 32>}, {transform_indices = @transform_1, window_bounds = array<i64: 16, 32>}, {transform_indices = @transform_2, window_bounds = array<i64: 16, 32>}, {pipeline_mode = #tpu.pipeline_mode<synchronous>, transform_indices = @transform_3, window_bounds = array<i64: 32, 32>}, {pipeline_mode = #tpu.pipeline_mode<synchronous>, transform_indices = @transform_4, window_bounds = array<i64: 32, 32>}, {pipeline_mode = #tpu.pipeline_mode<synchronous>, transform_indices = @transform_5, window_bounds = array<i64: 32, 32>}, {pipeline_mode = #tpu.pipeline_mode<synchronous>, transform_indices = @transform_6, window_bounds = array<i64: 1, 96>}, {transform_indices = @transform_7, window_bounds = array<i64: 16, 96>}]} {
    %c0 = arith.constant 0 : index
    %c0_0 = arith.constant 0 : index
    %0 = vector.load %arg1[%c0, %c0_0] : memref<16x32xf32, #tpu.memory_space<vmem>>, vector<16x32xf32>
    %c0_1 = arith.constant 0 : index
    %c0_2 = arith.constant 0 : index
    %1 = vector.load %arg4[%c0_1, %c0_2] : memref<32x32xf32, #tpu.memory_space<vmem>>, vector<32x32xf32>
    %cst = arith.constant dense<0.000000e+00> : vector<16x32xf32>
    %2 = tpu.matmul %0, %1, %cst {dimension_numbers = #tpu.dot_dimension_numbers<[1], [0], [0], [1], [0, 0, 1, 1], [], []>} : vector<16x32xf32>, vector<32x32xf32>, vector<16x32xf32> -> vector<16x32xf32>
    %c0_3 = arith.constant 0 : index
    %c0_4 = arith.constant 0 : index
    %3 = vector.load %arg2[%c0_3, %c0_4] : memref<16x32xf32, #tpu.memory_space<vmem>>, vector<16x32xf32>
    %c0_5 = arith.constant 0 : index
    %c0_6 = arith.constant 0 : index
    %4 = vector.load %arg5[%c0_5, %c0_6] : memref<32x32xf32, #tpu.memory_space<vmem>>, vector<32x32xf32>
    %cst_7 = arith.constant dense<0.000000e+00> : vector<16x32xf32>
    %5 = tpu.matmul %3, %4, %cst_7 {dimension_numbers = #tpu.dot_dimension_numbers<[1], [0], [0], [1], [0, 0, 1, 1], [], []>} : vector<16x32xf32>, vector<32x32xf32>, vector<16x32xf32> -> vector<16x32xf32>
    %c0_8 = arith.constant 0 : index
    %c0_9 = arith.constant 0 : index
    %6 = vector.load %arg3[%c0_8, %c0_9] : memref<16x32xf32, #tpu.memory_space<vmem>>, vector<16x32xf32>
    %c0_10 = arith.constant 0 : index
    %c0_11 = arith.constant 0 : index
    %7 = vector.load %arg6[%c0_10, %c0_11] : memref<32x32xf32, #tpu.memory_space<vmem>>, vector<32x32xf32>
    %cst_12 = arith.constant dense<0.000000e+00> : vector<16x32xf32>
    %8 = tpu.matmul %6, %7, %cst_12 {dimension_numbers = #tpu.dot_dimension_numbers<[1], [0], [0], [1], [0, 0, 1, 1], [], []>} : vector<16x32xf32>, vector<32x32xf32>, vector<16x32xf32> -> vector<16x32xf32>
    %9 = tpu.concatenate %2, %5, %8 in 1 : vector<16x32xf32>, vector<16x32xf32>, vector<16x32xf32> -> vector<16x96xf32>
    %c0_13 = arith.constant 0 : index
    %c0_14 = arith.constant 0 : index
    %10 = vector.load %arg7[%c0_13, %c0_14] : memref<1x96xf32, #tpu.memory_space<vmem>>, vector<1x96xf32>
    %11 = vector.broadcast %10 : vector<1x96xf32> to vector<16x96xf32>
    %12 = arith.addf %9, %11 : vector<16x96xf32>
    %c0_15 = arith.constant 0 : index
    %c0_16 = arith.constant 0 : index
    %13 = vector.load %arg8[%c0_15, %c0_16] : memref<16x96xf32, #tpu.memory_space<vmem>>, vector<16x96xf32>
    tpu.vector_store %arg8[%c0_15, %c0_16], %12 {strides = array<i32>} : memref<16x96xf32, #tpu.memory_space<vmem>>, vector<16x96xf32>,
    return
  }
  func.func @transform_0(%arg0: i32) -> (i32, i32) {
    %c0_i32 = arith.constant 0 : i32
    %c0_i32_0 = arith.constant 0 : i32
    return %arg0, %c0_i32 : i32, i32
  }
  func.func @transform_1(%arg0: i32) -> (i32, i32) {
    %c0_i32 = arith.constant 0 : i32
    %c0_i32_0 = arith.constant 0 : i32
    return %arg0, %c0_i32 : i32, i32
  }
  func.func @transform_2(%arg0: i32) -> (i32, i32) {
    %c0_i32 = arith.constant 0 : i32
    %c0_i32_0 = arith.constant 0 : i32
    return %arg0, %c0_i32 : i32, i32
  }
  func.func @transform_3(%arg0: i32) -> (i32, i32) {
    %c0_i32 = arith.constant 0 : i32
    %c0_i32_0 = arith.constant 0 : i32
    %c0_i32_1 = arith.constant 0 : i32
    return %c0_i32, %c0_i32_0 : i32, i32
  }
  func.func @transform_4(%arg0: i32) -> (i32, i32) {
    %c0_i32 = arith.constant 0 : i32
    %c0_i32_0 = arith.constant 0 : i32
    %c0_i32_1 = arith.constant 0 : i32
    return %c0_i32, %c0_i32_0 : i32, i32
  }
  func.func @transform_5(%arg0: i32) -> (i32, i32) {
    %c0_i32 = arith.constant 0 : i32
    %c0_i32_0 = arith.constant 0 : i32
    %c0_i32_1 = arith.constant 0 : i32
    return %c0_i32, %c0_i32_0 : i32, i32
  }
  func.func @transform_6(%arg0: i32) -> (i32, i32) {
    %c0_i32 = arith.constant 0 : i32
    %c0_i32_0 = arith.constant 0 : i32
    %c0_i32_1 = arith.constant 0 : i32
    return %c0_i32, %c0_i32_0 : i32, i32
  }
  func.func @transform_7(%arg0: i32) -> (i32, i32) {
    %c0_i32 = arith.constant 0 : i32
    %c0_i32_0 = arith.constant 0 : i32
    return %arg0, %c0_i32 : i32, i32
  }
}

</mosaic_0001>

<llo_original>
// kernel: tpu_custom_call.1
$region0: #{tpu_custom_call.1}
  #allocation0 [shape = 'u32[]', space=smem, size = 0x4, offset = 0x4, fixed_abs, tag = 'smem constant byte address 0x4 - core index']
  #allocation1 [shape = 'u32[72,128]{1,0:T(1,128)}', space=vmem, size = 0x9000, scoped, tag = 'internal scratch']
  %s0 = inlined_call_operand.hbm [shape: f32[16,32], index: 0, kind: input, shape index: {}]
  %s1 = inlined_call_operand.hbm [shape: f32[16,32], index: 1, kind: input, shape index: {}]
  %s2 = inlined_call_operand.hbm [shape: f32[16,32], index: 2, kind: input, shape index: {}]
  %s3 = inlined_call_operand.hbm [shape: f32[32,32], index: 3, kind: input, shape index: {}]
  %s4 = inlined_call_operand.hbm [shape: f32[32,32], index: 4, kind: input, shape index: {}]
  %s5 = inlined_call_operand.hbm [shape: f32[32,32], index: 5, kind: input, shape index: {}]
  %s6 = inlined_call_operand.vmem [shape: f32[1,96], index: 6, kind: input, shape index: {}]
  %s7 = inlined_call_operand.hbm [shape: f32[16,96], index: 7, kind: output, shape index: {}]
  %s8 = sld [smem:[#allocation0]]
  $region62: #{tpu_custom_call.1} parent=0
    _
  %s10 = ssub.s32 1, %s8
  %s11 = scalar_select 0, %s10, %s8
  $region1: #{tpu_custom_call.1} parent=0
    #allocation2 [shape = 'u8[8192]{0}', space=vmem, size = 0x2000, scoped, tag = 'input window, operand 0, single buffered']
    #allocation3 [shape = 's32[1]{0}', space=sflag, size = 0x4, scoped, tag = 'scoped memory for tpu_custom_call.1']
    #allocation4 [shape = 's32[1]{0}', space=sflag, size = 0x4, scoped, tag = 'scoped memory for tpu_custom_call.1']
    #allocation5 [shape = 'u8[8192]{0}', space=vmem, size = 0x2000, scoped, tag = 'input window, operand 1, single buffered']
    #allocation6 [shape = 's32[1]{0}', space=sflag, size = 0x4, scoped, tag = 'scoped memory for tpu_custom_call.1']
    #allocation7 [shape = 'u8[8192]{0}', space=vmem, size = 0x2000, scoped, tag = 'input window, operand 2, single buffered']
    #allocation8 [shape = 'u8[16384]{0}', space=vmem, size = 0x4000, scoped, tag = 'input window, operand 3, single buffered']
    #allocation9 [shape = 's32[1]{0}', space=sflag, size = 0x4, scoped, tag = 'scoped memory for tpu_custom_call.1']
    #allocation10 [shape = 'u8[16384]{0}', space=vmem, size = 0x4000, scoped, tag = 'input window, operand 4, single buffered']
    #allocation11 [shape = 'u8[16384]{0}', space=vmem, size = 0x4000, scoped, tag = 'input window, operand 5, single buffered']
    #allocation12 [shape = 's32[1]{0}', space=sflag, size = 0x4, scoped, tag = 'scoped memory for tpu_custom_call.1']
    #allocation13 [shape = 'u8[8192]{0}', space=vmem, size = 0x2000, scoped, tag = 'output window, operand 0, single buffered']
    %12 = vsyncpa [#allocation3], 0
    %13 = vsyncpa [#allocation6], 0
    %14 = vsyncpa [#allocation9], 0
    %15 = vsyncpa [#allocation12], 0
    %16 = vsyncpa [#allocation4], 0
    // Predicated region
    $region2: #{tpu_custom_call.1} parent=1 // pred_check
      _
    $region3: #{tpu_custom_call.1} parent=1 // pred_check_branch
      %18 = sbr.rel (0) target = $region5
    $region4: #{tpu_custom_call.1} parent=1 // pred_region
      %20 = vsyncadd [#allocation3], 0
      %s21 = sshll.u32 %s0, 4
      %s22 = int_to_ptr.hbm [resolvable:$true] %s21
      %s23 = sshll.u32 [#allocation2], 4
      %s24 = int_to_ptr.vmem [resolvable:$true] %s23
      %29 = dma.hbm_to_vmem [thread:$0]  %s22, 256, %s24, [#allocation3], 128, 128, 8
    $region5: #{tpu_custom_call.1} parent=1 // pred_fallthru
      _
    // Predicated region
    $region6: #{tpu_custom_call.1} parent=1 // pred_check
      _
    $region7: #{tpu_custom_call.1} parent=1 // pred_check_branch
      %31 = sbr.rel (0) target = $region9
    $region8: #{tpu_custom_call.1} parent=1 // pred_region
      %33 = vsyncadd [#allocation6], 0
      %s34 = sshll.u32 %s1, 4
      %s35 = int_to_ptr.hbm [resolvable:$true] %s34
      %s36 = sshll.u32 [#allocation5], 4
      %s37 = int_to_ptr.vmem [resolvable:$true] %s36
      %42 = dma.hbm_to_vmem [thread:$0]  %s35, 256, %s37, [#allocation6], 128, 128, 8
    $region9: #{tpu_custom_call.1} parent=1 // pred_fallthru
      _
    // Predicated region
    $region10: #{tpu_custom_call.1} parent=1 // pred_check
      _
    $region11: #{tpu_custom_call.1} parent=1 // pred_check_branch
      %44 = sbr.rel (0) target = $region13
    $region12: #{tpu_custom_call.1} parent=1 // pred_region
      %46 = vsyncadd [#allocation6], 0
      %s47 = sshll.u32 %s2, 4
      %s48 = int_to_ptr.hbm [resolvable:$true] %s47
      %s49 = sshll.u32 [#allocation7], 4
      %s50 = int_to_ptr.vmem [resolvable:$true] %s49
      %55 = dma.hbm_to_vmem [thread:$0]  %s48, 256, %s50, [#allocation6], 128, 128, 8
    $region13: #{tpu_custom_call.1} parent=1 // pred_fallthru
      _
    // Predicated region
    $region14: #{tpu_custom_call.1} parent=1 // pred_check
      _
    $region15: #{tpu_custom_call.1} parent=1 // pred_check_branch
      %57 = sbr.rel (0) target = $region17
    $region16: #{tpu_custom_call.1} parent=1 // pred_region
      %59 = vsyncadd [#allocation9], 0
      %s60 = sshll.u32 %s3, 4
      %s61 = int_to_ptr.hbm [resolvable:$true] %s60
      %s62 = sshll.u32 [#allocation8], 4
      %s63 = int_to_ptr.vmem [resolvable:$true] %s62
      %68 = dma.hbm_to_vmem [thread:$0]  %s61, 512, %s63, [#allocation9], 128, 128, 8
    $region17: #{tpu_custom_call.1} parent=1 // pred_fallthru
      _
    // Predicated region
    $region18: #{tpu_custom_call.1} parent=1 // pred_check
      _
    $region19: #{tpu_custom_call.1} parent=1 // pred_check_branch
      %70 = sbr.rel (0) target = $region21
    $region20: #{tpu_custom_call.1} parent=1 // pred_region
      %72 = vsyncadd [#allocation9], 0
      %s73 = sshll.u32 %s4, 4
      %s74 = int_to_ptr.hbm [resolvable:$true] %s73
      %s75 = sshll.u32 [#allocation10], 4
      %s76 = int_to_ptr.vmem [resolvable:$true] %s75
      %81 = dma.hbm_to_vmem [thread:$0]  %s74, 512, %s76, [#allocation9], 128, 128, 8
    $region21: #{tpu_custom_call.1} parent=1 // pred_fallthru
      _
    // Predicated region
    $region22: #{tpu_custom_call.1} parent=1 // pred_check
      _
    $region23: #{tpu_custom_call.1} parent=1 // pred_check_branch
      %83 = sbr.rel (0) target = $region25
    $region24: #{tpu_custom_call.1} parent=1 // pred_region
      %85 = vsyncadd [#allocation12], 0
      %s86 = sshll.u32 %s5, 4
      %s87 = int_to_ptr.hbm [resolvable:$true] %s86
      %s88 = sshll.u32 [#allocation11], 4
      %s89 = int_to_ptr.vmem [resolvable:$true] %s88
      %94 = dma.hbm_to_vmem [thread:$0]  %s87, 512, %s89, [#allocation12], 128, 128, 8
    $region25: #{tpu_custom_call.1} parent=1 // pred_fallthru
      _
    // Predicated region
    $region26: #{tpu_custom_call.1} parent=1 // pred_check
      _
    $region27: #{tpu_custom_call.1} parent=1 // pred_check_branch
      %96 = sbr.rel (0) target = $region29
    $region28: #{tpu_custom_call.1} parent=1 // pred_region
      _
    $region29: #{tpu_custom_call.1} parent=1 // pred_fallthru
      _
    // Predicated region
    $region30: #{tpu_custom_call.1} parent=1 // pred_check
      _
    $region31: #{tpu_custom_call.1} parent=1 // pred_check_branch
      %98 = sbr.rel (0) target = $region33
    $region32: #{tpu_custom_call.1} parent=1 // pred_region
      %100 = dma.done [#allocation3], 256
    $region33: #{tpu_custom_call.1} parent=1 // pred_fallthru
      _
    // Predicated region
    $region34: #{tpu_custom_call.1} parent=1 // pred_check
      _
    $region35: #{tpu_custom_call.1} parent=1 // pred_check_branch
      %102 = sbr.rel (0) target = $region37
    $region36: #{tpu_custom_call.1} parent=1 // pred_region
      %104 = dma.done [#allocation6], 256
    $region37: #{tpu_custom_call.1} parent=1 // pred_fallthru
      _
    // Predicated region
    $region38: #{tpu_custom_call.1} parent=1 // pred_check
      _
    $region39: #{tpu_custom_call.1} parent=1 // pred_check_branch
      %106 = sbr.rel (0) target = $region41
    $region40: #{tpu_custom_call.1} parent=1 // pred_region
      %108 = dma.done [#allocation6], 256
    $region41: #{tpu_custom_call.1} parent=1 // pred_fallthru
      _
    // Predicated region
    $region42: #{tpu_custom_call.1} parent=1 // pred_check
      _
    $region43: #{tpu_custom_call.1} parent=1 // pred_check_branch
      %110 = sbr.rel (0) target = $region45
    $region44: #{tpu_custom_call.1} parent=1 // pred_region
      %112 = dma.done [#allocation9], 512
    $region45: #{tpu_custom_call.1} parent=1 // pred_fallthru
      _
    // Predicated region
    $region46: #{tpu_custom_call.1} parent=1 // pred_check
      _
    $region47: #{tpu_custom_call.1} parent=1 // pred_check_branch
      %114 = sbr.rel (0) target = $region49
    $region48: #{tpu_custom_call.1} parent=1 // pred_region
      %116 = dma.done [#allocation9], 512
    $region49: #{tpu_custom_call.1} parent=1 // pred_fallthru
      _
    // Predicated region
    $region50: #{tpu_custom_call.1} parent=1 // pred_check
      _
    $region51: #{tpu_custom_call.1} parent=1 // pred_check_branch
      %118 = sbr.rel (0) target = $region53
    $region52: #{tpu_custom_call.1} parent=1 // pred_region
      %120 = dma.done [#allocation12], 512
    $region53: #{tpu_custom_call.1} parent=1 // pred_fallthru
      _
    %v121 = vld [vmem:[#allocation2] sm:$0xff]
    %v122 = vld [vmem:[#allocation2 + $0x8] sm:$0xff]
    %v123 = vld [vmem:[#allocation8] sm:$0xff]
    %v124 = vld [vmem:[#allocation8 + $0x8] sm:$0xff]
    %v125 = vld [vmem:[#allocation8 + $0x10] sm:$0xff]
    %v126 = vld [vmem:[#allocation8 + $0x18] sm:$0xff]
    %vm127 = vcmask 261120
    %v129 = vsel %vm127, %v121, 0
    %v132 = vsel %vm127, %v122, 0
    %134 = vmatpush.msra.mxu0 0.0
    %135 = vmatpush.msra.mxu0 0.0
    %136 = vmatpush.msra.mxu0 0.0
    %137 = vmatpush.msra.mxu0 0.0
    %138 = vmatpush.msra.mxu0 0.0
    %139 = vmatpush.msra.mxu0 0.0
    %140 = vmatpush.msra.mxu0 0.0
    %141 = vmatpush.msra.mxu0 0.0
    %142 = vmatpush.msra.mxu0 0.0
    %143 = vmatpush.msra.mxu0 0.0
    %144 = vmatpush.msra.mxu0 0.0
    %145 = vmatpush.msra.mxu0 0.0
    %146 = vmatpush.msra.mxu0 %v126
    %147 = vmatpush.msra.mxu0 %v125
    %148 = vmatpush.msra.mxu0 %v124
    %149 = vmatpush.msra.mxu0 %v123
    %150 = vmatmul.f32.gmra.mxu0 %v129
    %v151 = vpop.f32.mrf.mxu0
    %v152 = vadd.f32 0.0, %v151
    %153 = vmatmul.f32.gmra.mxu0 %v132
    %v154 = vpop.f32.mrf.mxu0
    %v155 = vadd.f32 0.0, %v154
    %156 = vdwg.mxu0
    %v157 = vld [vmem:[#allocation5] sm:$0xff]
    %v158 = vld [vmem:[#allocation5 + $0x8] sm:$0xff]
    %v159 = vld [vmem:[#allocation10] sm:$0xff]
    %v160 = vld [vmem:[#allocation10 + $0x8] sm:$0xff]
    %v161 = vld [vmem:[#allocation10 + $0x10] sm:$0xff]
    %v162 = vld [vmem:[#allocation10 + $0x18] sm:$0xff]
    %v164 = vsel %vm127, %v157, 0
    %v167 = vsel %vm127, %v158, 0
    %169 = vmatpush.msra.mxu0 0.0
    %170 = vmatpush.msra.mxu0 0.0
    %171 = vmatpush.msra.mxu0 0.0
    %172 = vmatpush.msra.mxu0 0.0
    %173 = vmatpush.msra.mxu0 0.0
    %174 = vmatpush.msra.mxu0 0.0
    %175 = vmatpush.msra.mxu0 0.0
    %176 = vmatpush.msra.mxu0 0.0
    %177 = vmatpush.msra.mxu0 0.0
    %178 = vmatpush.msra.mxu0 0.0
    %179 = vmatpush.msra.mxu0 0.0
    %180 = vmatpush.msra.mxu0 0.0
    %181 = vmatpush.msra.mxu0 %v162
    %182 = vmatpush.msra.mxu0 %v161
    %183 = vmatpush.msra.mxu0 %v160
    %184 = vmatpush.msra.mxu0 %v159
    %185 = vmatmul.f32.gmra.mxu0 %v164
    %v186 = vpop.f32.mrf.mxu0
    %v187 = vadd.f32 0.0, %v186
    %188 = vmatmul.f32.gmra.mxu0 %v167
    %v189 = vpop.f32.mrf.mxu0
    %v190 = vadd.f32 0.0, %v189
    %191 = vdwg.mxu0
    %v192 = vld [vmem:[#allocation7] sm:$0xff]
    %v193 = vld [vmem:[#allocation7 + $0x8] sm:$0xff]
    %v194 = vld [vmem:[#allocation11] sm:$0xff]
    %v195 = vld [vmem:[#allocation11 + $0x8] sm:$0xff]
    %v196 = vld [vmem:[#allocation11 + $0x10] sm:$0xff]
    %v197 = vld [vmem:[#allocation11 + $0x18] sm:$0xff]
    %v199 = vsel %vm127, %v192, 0
    %v202 = vsel %vm127, %v193, 0
    %204 = vmatpush.msra.mxu0 0.0
    %205 = vmatpush.msra.mxu0 0.0
    %206 = vmatpush.msra.mxu0 0.0
    %207 = vmatpush.msra.mxu0 0.0
    %208 = vmatpush.msra.mxu0 0.0
    %209 = vmatpush.msra.mxu0 0.0
    %210 = vmatpush.msra.mxu0 0.0
    %211 = vmatpush.msra.mxu0 0.0
    %212 = vmatpush.msra.mxu0 0.0
    %213 = vmatpush.msra.mxu0 0.0
    %214 = vmatpush.msra.mxu0 0.0
    %215 = vmatpush.msra.mxu0 0.0
    %216 = vmatpush.msra.mxu0 %v197
    %217 = vmatpush.msra.mxu0 %v196
    %218 = vmatpush.msra.mxu0 %v195
    %219 = vmatpush.msra.mxu0 %v194
    %220 = vmatmul.f32.gmra.mxu0 %v199
    %v221 = vpop.f32.mrf.mxu0
    %v222 = vadd.f32 0.0, %v221
    %223 = vmatmul.f32.gmra.mxu0 %v202
    %v224 = vpop.f32.mrf.mxu0
    %v225 = vadd.f32 0.0, %v224
    %226 = vdwg.mxu0
    %229 = vrot.lane.b32.xlu0 %v187, 32
    %v230 = vpop.permute.xlu0 %229
    %231 = vrot.lane.b32.xlu0 %v190, 32
    %v232 = vpop.permute.xlu0 %231
    %237 = vrot.lane.b32.xlu0 %v222, 64
    %v238 = vpop.permute.xlu0 %237
    %239 = vrot.lane.b32.xlu0 %v225, 64
    %v240 = vpop.permute.xlu0 %239
    %v243 = vsel %vm127, %v152, %v230
    %v244 = vsel %vm127, %v155, %v232
    %vm245 = vcmask 523264
    %v246 = vsel %vm245, %v243, %v238
    %v247 = vsel %vm245, %v244, %v240
    %v248 = vld [vmem:[%s6] sm:$0x1]
    %v250 = vperm.slane %v248, 0
    %v252 = vadd.f32 %v246, %v250
    %v253 = vadd.f32 %v247, %v250
    %vm254 = vcmask 785408
    %255 = vst.msk [vmem:[#allocation13] sm:$0xff] %vm254, %v252
    %256 = vst.msk [vmem:[#allocation13 + $0x8] sm:$0xff] %vm254, %v253
    // Predicated region
    $region54: #{tpu_custom_call.1} parent=1 // pred_check
      _
    $region55: #{tpu_custom_call.1} parent=1 // pred_check_branch
      %258 = sbr.rel (0) target = $region57
    $region56: #{tpu_custom_call.1} parent=1 // pred_region
      %260 = vsyncadd [#allocation4], 0
      %s261 = sshll.u32 [#allocation13], 4
      %s262 = int_to_ptr.vmem [resolvable:$true] %s261
      %s263 = sshll.u32 %s7, 4
      %s264 = int_to_ptr.hbm [resolvable:$true] %s263
      %269 = dma.vmem_to_hbm [thread:$0]  %s262, 256, %s264, [#allocation4], 128, 128, 8
    $region57: #{tpu_custom_call.1} parent=1 // pred_fallthru
      _
    // Predicated region
    $region58: #{tpu_custom_call.1} parent=1 // pred_check
      _
    $region59: #{tpu_custom_call.1} parent=1 // pred_check_branch
      %271 = sbr.rel (0) target = $region61
    $region60: #{tpu_custom_call.1} parent=1 // pred_region
      %273 = dma.done [#allocation4], 256
    $region61: #{tpu_custom_call.1} parent=1 // pred_fallthru
      _
    %274 = vsyncpa [#allocation3], 1
    %275 = vsyncpa [#allocation6], 1
    %276 = vsyncpa [#allocation9], 1
    %277 = vsyncpa [#allocation12], 1
    %278 = vsyncpa [#allocation4], 1

</llo_original>
